<compile_context>
chip_gen: v7x
topology: tpu7x:2x2x1
jax: 0.10.0
libtpu: 0.0.40
codegen_flags: <defaults>
</compile_context>

<pallas_src>
import functools

import jax
import jax.numpy as jnp
from jax.experimental import pallas as pl
from jax.experimental.pallas import tpu as pltpu


def _round_up(x, m):
    return ((x + m - 1) // m) * m


def _kd_kernel(x_ref, w1_ref, b1_ref, w2_ref, b2_ref, *rest, normalize, mxu_dtype):
    # x_ref:  (TM, F*Cin)      w1_ref: (F*Cin, F*Cmid)   b1_ref: (1, F*Cmid) f32
    # w2_ref: (F*Cmid, F*Cout) b2_ref: (1, F*Cout) f32
    # s_ref (only if normalize): (F*Cout, F*Cout) 0/1 block-diag segment-sum
    # o_ref:  (TM, F*Cout)
    if normalize:
        s_ref, o_ref = rest
    else:
        (o_ref,) = rest

    use_f32_mxu = jnp.dtype(mxu_dtype) == jnp.dtype(jnp.float32)
    dot_kwargs = dict(preferred_element_type=jnp.float32)
    if use_f32_mxu:
        # Make f32 MXU precision explicit instead of relying on defaults.
        dot_kwargs["precision"] = jax.lax.Precision.HIGHEST

    # MXU matmuls in mxu_dtype (bf16 by default), f32 accumulation.
    x = x_ref[...].astype(mxu_dtype)
    h = jnp.dot(x, w1_ref[...], **dot_kwargs)
    h = jnp.maximum(h + b1_ref[...], 0.0)                 # f32 epilogue (v5e safe)

    # Intentional: the f32 accumulator is rounded to mxu_dtype before matmul 2.
    y = jnp.dot(h.astype(mxu_dtype), w2_ref[...], **dot_kwargs)
    y = y + b2_ref[...]

    if normalize:
        # F.normalize(y, p=2, dim=1, eps=1e-12) == y * rsqrt(max(sum(y^2), eps^2)).
        # Segmented per-Cout-lane sum via (y*y) @ S (block-diag 0/1 matrix).
        yy = y * y                                          # f32, >= 0
        if use_f32_mxu:
            sumsq = jnp.dot(yy, s_ref[...].astype(jnp.float32),
                            preferred_element_type=jnp.float32,
                            precision=jax.lax.Precision.HIGHEST)
        else:
            # hi/lo bf16 split: two cheap single-pass matmuls, ~2^-16 rel error,
            # instead of a 6-pass f32 matmul.
            hi = yy.astype(mxu_dtype)
            lo = (yy - hi.astype(jnp.float32)).astype(mxu_dtype)
            sumsq = (jnp.dot(hi, s_ref[...], preferred_element_type=jnp.float32)
                     + jnp.dot(lo, s_ref[...], preferred_element_type=jnp.float32))
        y = y * jax.lax.rsqrt(jnp.maximum(sumsq, 1e-24))    # EUP rsqrt

    o_ref[...] = y.astype(o_ref.dtype)


@functools.partial(jax.jit, static_argnames=("normalize", "tm", "fold", "mxu_dtype"))
def keypoint_descriptor(feats, w1, b1, w2, b2, *, normalize=True, tm=1024,
                        fold=8, mxu_dtype=jnp.bfloat16):
    """feats: (N, Cin). w1: (Cin, Cmid), b1: (Cmid,), w2: (Cmid, Cout), b2: (Cout,).

    Weights are pre-transposed to (C_in, C_out) so the kernel does row-major
    x @ W matmuls on the MXU.  `tm` is the row tile in FOLDED rows (= tm*fold
    points).  Output dtype follows feats.dtype.
    """
    n, cin = feats.shape
    cmid = w1.shape[1]
    cout = w2.shape[1]

    # --- Row folding: pad N only to a multiple of `fold` (<= fold-1 rows),
    # then a free contiguous reshape (N, Cin) -> (N/fold, fold*Cin).
    n_pad = _round_up(n, fold)
    if n_pad != n:
        feats = jnp.pad(feats, ((0, n_pad - n), (0, 0)))
    nf = n_pad // fold
    x_folded = feats.reshape(nf, fold * cin)

    # Block-diagonal folded params (tiny; built on the fly).
    w1_bd = jnp.kron(jnp.eye(fold, dtype=w1.dtype), w1).astype(mxu_dtype)
    w2_bd = jnp.kron(jnp.eye(fold, dtype=w2.dtype), w2).astype(mxu_dtype)
    b1_bd = jnp.tile(b1.astype(jnp.float32), fold).reshape(1, fold * cmid)
    b2_bd = jnp.tile(b2.astype(jnp.float32), fold).reshape(1, fold * cout)

    # Row tile (folded rows): large for HBM-roofline amortization, but capped
    # so the "parallel" grid keeps >= ~8 steps when N allows (v7x megacore:
    # several pipelined steps per TensorCore).
    tm_cap = _round_up(max(pl.cdiv(nf, 8), 8), 8)
    tm_eff = max(8, min(tm, tm_cap))
    grid = (pl.cdiv(nf, tm_eff),)          # ragged last block handled by Pallas

    in_specs = [
        pl.BlockSpec((tm_eff, fold * cin), lambda i: (i, 0)),     # feature rows
        pl.BlockSpec((fold * cin, fold * cmid), lambda i: (0, 0)),  # W1 (resident)
        pl.BlockSpec((1, fold * cmid), lambda i: (0, 0)),           # b1
        pl.BlockSpec((fold * cmid, fold * cout), lambda i: (0, 0)),  # W2 (resident)
        pl.BlockSpec((1, fold * cout), lambda i: (0, 0)),            # b2
    ]
    operands = [x_folded, w1_bd, b1_bd, w2_bd, b2_bd]
    if normalize:
        # 0/1 block-diagonal "segment-broadcast-sum" matrix.
        s_mat = jnp.kron(jnp.eye(fold, dtype=jnp.float32),
                         jnp.ones((cout, cout), dtype=jnp.float32)).astype(mxu_dtype)
        in_specs.append(pl.BlockSpec((fold * cout, fold * cout), lambda i: (0, 0)))
        operands.append(s_mat)

    itemsize = jnp.dtype(feats.dtype).itemsize
    w_bytes = (w1_bd.size + w2_bd.size) * jnp.dtype(mxu_dtype).itemsize
    flops = 2 * n_pad * (cin * cmid + cmid * cout)
    if normalize:
        flops += 4 * n_pad * cout
    cost = pl.CostEstimate(
        flops=int(flops),
        transcendentals=int(n_pad if normalize else 0),
        bytes_accessed=int(n_pad * (cin + cout) * itemsize + w_bytes),
    )

    out = pl.pallas_call(
        functools.partial(_kd_kernel, normalize=normalize, mxu_dtype=mxu_dtype),
        out_shape=jax.ShapeDtypeStruct((nf, fold * cout), feats.dtype),
        grid_spec=pltpu.PrefetchScalarGridSpec(
            num_scalar_prefetch=0,
            grid=grid,
            in_specs=in_specs,
            out_specs=pl.BlockSpec((tm_eff, fold * cout), lambda i: (i, 0)),
        ),
        compiler_params=pltpu.CompilerParams(
            dimension_semantics=("parallel",)),
        cost_estimate=cost,
    )(*operands)

    out = out.reshape(n_pad, cout)          # free contiguous un-fold
    if n_pad != n:
        out = out[:n]                       # small (N, Cout) trim only when padded
    return out


def init_params(key, in_channels, out_channels, dtype=jnp.float32):
    """Deterministic synthetic params matching nn.Linear shapes.
    Weights returned pre-transposed to (C_in, C_out)."""
    middle_channels = out_channels + (in_channels - out_channels) // 2
    k1, k2, k3, k4 = jax.random.split(key, 4)
    lim1 = 1.0 / jnp.sqrt(jnp.float32(in_channels))
    lim2 = 1.0 / jnp.sqrt(jnp.float32(middle_channels))
    w1 = jax.random.uniform(k1, (in_channels, middle_channels), dtype, -lim1, lim1)
    b1 = jax.random.uniform(k2, (middle_channels,), dtype, -lim1, lim1)
    w2 = jax.random.uniform(k3, (middle_channels, out_channels), dtype, -lim2, lim2)
    b2 = jax.random.uniform(k4, (out_channels,), dtype, -lim2, lim2)
    return w1, b1, w2, b2


def reference_f32(feats, w1, b1, w2, b2, normalize=True):
    """Pure-f32 reference (module semantics)."""
    h = jnp.maximum(feats @ w1 + b1, 0.0)
    y = h @ w2 + b2
    if normalize:
        sumsq = jnp.sum(y * y, axis=-1, keepdims=True)
        y = y * jax.lax.rsqrt(jnp.maximum(sumsq, 1e-24))
    return y


def reference_matched(feats, w1, b1, w2, b2, normalize=True, mxu_dtype=jnp.bfloat16):
    """Reference mirroring the kernel's precision model (bf16 MXU, f32 accum/epilogue)."""
    h = jnp.dot(feats.astype(mxu_dtype), w1.astype(mxu_dtype),
                preferred_element_type=jnp.float32)
    h = jnp.maximum(h + b1.astype(jnp.float32), 0.0)
    y = jnp.dot(h.astype(mxu_dtype), w2.astype(mxu_dtype),
                preferred_element_type=jnp.float32)
    y = y + b2.astype(jnp.float32)
    if normalize:
        sumsq = jnp.sum(y * y, axis=-1, keepdims=True)
        y = y * jax.lax.rsqrt(jnp.maximum(sumsq, 1e-24))
    return y.astype(feats.dtype)


if __name__ == "__main__":
    in_channels = 32
    out_channels = 16          # middle_channels = 16 + (32 - 16) // 2 = 24
    n_points = 230             # NOT a multiple of 8 -> exercises fold pad + ragged last tile

    key = jax.random.PRNGKey(0)
    kf, kp = jax.random.split(key)
    feats = jax.random.normal(kf, (n_points, in_channels), jnp.float32)
    w1, b1, w2, b2 = init_params(kp, in_channels, out_channels)

    # normalize=True path (default bf16 MXU operands, f32 accumulation/epilogue).
    out = keypoint_descriptor(feats, w1, b1, w2, b2, normalize=True)
    out = jax.block_until_ready(out)
    assert out.shape == (n_points, out_channels)
    ref_m = reference_matched(feats, w1, b1, w2, b2, normalize=True)
    assert jnp.allclose(out, ref_m, atol=1e-4, rtol=1e-4), "mismatch vs matched ref (normalize=True)"
    ref_f = reference_f32(feats, w1, b1, w2, b2, normalize=True)
    assert jnp.allclose(out, ref_f, atol=2e-2, rtol=2e-2), "mismatch vs f32 ref (normalize=True)"

    # normalize=False path.
    out_nn = keypoint_descriptor(feats, w1, b1, w2, b2, normalize=False)
    out_nn = jax.block_until_ready(out_nn)
    ref_m_nn = reference_matched(feats, w1, b1, w2, b2, normalize=False)
    assert jnp.allclose(out_nn, ref_m_nn, atol=1e-4, rtol=1e-4), "mismatch vs matched ref (normalize=False)"
    ref_f_nn = reference_f32(feats, w1, b1, w2, b2, normalize=False)
    assert jnp.allclose(out_nn, ref_f_nn, atol=2e-2, rtol=2e-2), "mismatch vs f32 ref (normalize=False)"

    print("KERNEL_OK")
</pallas_src>

<mosaic_0001>
module attributes {stable_mosaic.version = 11 : i64} {
  func.func @_kd_kernel(%arg0: i32, %arg1: memref<8x256xf32, #tpu.memory_space<vmem>>, %arg2: memref<256x192xbf16, #tpu.memory_space<vmem>>, %arg3: memref<1x192xf32, #tpu.memory_space<vmem>>, %arg4: memref<192x128xbf16, #tpu.memory_space<vmem>>, %arg5: memref<1x128xf32, #tpu.memory_space<vmem>>, %arg6: memref<128x128xbf16, #tpu.memory_space<vmem>>, %arg7: memref<8x128xf32, #tpu.memory_space<vmem>>) attributes {dimension_semantics = [#tpu.dimension_semantics<parallel>], iteration_bounds = array<i64: 4>, scalar_prefetch = 0 : i64, scratch_operands = 0 : i64, tpu.core_type = #tpu.core_type<tc>, window_params = [{transform_indices = @transform_0, window_bounds = array<i64: 8, 256>}, {pipeline_mode = #tpu.pipeline_mode<synchronous>, transform_indices = @transform_1, window_bounds = array<i64: 256, 192>}, {pipeline_mode = #tpu.pipeline_mode<synchronous>, transform_indices = @transform_2, window_bounds = array<i64: 1, 192>}, {pipeline_mode = #tpu.pipeline_mode<synchronous>, transform_indices = @transform_3, window_bounds = array<i64: 192, 128>}, {pipeline_mode = #tpu.pipeline_mode<synchronous>, transform_indices = @transform_4, window_bounds = array<i64: 1, 128>}, {pipeline_mode = #tpu.pipeline_mode<synchronous>, transform_indices = @transform_5, window_bounds = array<i64: 128, 128>}, {transform_indices = @transform_6, window_bounds = array<i64: 8, 128>}]} {
    %c0 = arith.constant 0 : index
    %c0_0 = arith.constant 0 : index
    %0 = vector.load %arg1[%c0, %c0_0] : memref<8x256xf32, #tpu.memory_space<vmem>>, vector<8x256xf32>
    %1 = arith.truncf %0 : vector<8x256xf32> to vector<8x256xbf16>
    %c0_1 = arith.constant 0 : index
    %c0_2 = arith.constant 0 : index
    %2 = vector.load %arg2[%c0_1, %c0_2] : memref<256x192xbf16, #tpu.memory_space<vmem>>, vector<256x192xbf16>
    %cst = arith.constant dense<0.000000e+00> : vector<8x192xf32>
    %3 = tpu.matmul %1, %2, %cst {dimension_numbers = #tpu.dot_dimension_numbers<[1], [0], [0], [1], [0, 0, 1, 1], [], []>} : vector<8x256xbf16>, vector<256x192xbf16>, vector<8x192xf32> -> vector<8x192xf32>
    %c0_3 = arith.constant 0 : index
    %c0_4 = arith.constant 0 : index
    %4 = vector.load %arg3[%c0_3, %c0_4] : memref<1x192xf32, #tpu.memory_space<vmem>>, vector<1x192xf32>
    %5 = vector.broadcast %4 : vector<1x192xf32> to vector<8x192xf32>
    %6 = arith.addf %3, %5 : vector<8x192xf32>
    %cst_5 = arith.constant 0.000000e+00 : f32
    %7 = vector.broadcast %cst_5 : f32 to vector<8x192xf32>
    %8 = arith.maximumf %6, %7 : vector<8x192xf32>
    %9 = arith.truncf %8 : vector<8x192xf32> to vector<8x192xbf16>
    %c0_6 = arith.constant 0 : index
    %c0_7 = arith.constant 0 : index
    %10 = vector.load %arg4[%c0_6, %c0_7] : memref<192x128xbf16, #tpu.memory_space<vmem>>, vector<192x128xbf16>
    %cst_8 = arith.constant dense<0.000000e+00> : vector<8x128xf32>
    %11 = tpu.matmul %9, %10, %cst_8 {dimension_numbers = #tpu.dot_dimension_numbers<[1], [0], [0], [1], [0, 0, 1, 1], [], []>} : vector<8x192xbf16>, vector<192x128xbf16>, vector<8x128xf32> -> vector<8x128xf32>
    %c0_9 = arith.constant 0 : index
    %c0_10 = arith.constant 0 : index
    %12 = vector.load %arg5[%c0_9, %c0_10] : memref<1x128xf32, #tpu.memory_space<vmem>>, vector<1x128xf32>
    %13 = vector.broadcast %12 : vector<1x128xf32> to vector<8x128xf32>
    %14 = arith.addf %11, %13 : vector<8x128xf32>
    %15 = arith.mulf %14, %14 : vector<8x128xf32>
    %16 = arith.truncf %15 : vector<8x128xf32> to vector<8x128xbf16>
    %17 = arith.extf %16 : vector<8x128xbf16> to vector<8x128xf32>
    %18 = arith.subf %15, %17 : vector<8x128xf32>
    %19 = arith.truncf %18 : vector<8x128xf32> to vector<8x128xbf16>
    %c0_11 = arith.constant 0 : index
    %c0_12 = arith.constant 0 : index
    %20 = vector.load %arg6[%c0_11, %c0_12] : memref<128x128xbf16, #tpu.memory_space<vmem>>, vector<128x128xbf16>
    %cst_13 = arith.constant dense<0.000000e+00> : vector<8x128xf32>
    %21 = tpu.matmul %16, %20, %cst_13 {dimension_numbers = #tpu.dot_dimension_numbers<[1], [0], [0], [1], [0, 0, 1, 1], [], []>} : vector<8x128xbf16>, vector<128x128xbf16>, vector<8x128xf32> -> vector<8x128xf32>
    %c0_14 = arith.constant 0 : index
    %c0_15 = arith.constant 0 : index
    %22 = vector.load %arg6[%c0_14, %c0_15] : memref<128x128xbf16, #tpu.memory_space<vmem>>, vector<128x128xbf16>
    %cst_16 = arith.constant dense<0.000000e+00> : vector<8x128xf32>
    %23 = tpu.matmul %19, %22, %cst_16 {dimension_numbers = #tpu.dot_dimension_numbers<[1], [0], [0], [1], [0, 0, 1, 1], [], []>} : vector<8x128xbf16>, vector<128x128xbf16>, vector<8x128xf32> -> vector<8x128xf32>
    %24 = arith.addf %21, %23 : vector<8x128xf32>
    %cst_17 = arith.constant 1.000000e-24 : f32
    %25 = vector.broadcast %cst_17 : f32 to vector<8x128xf32>
    %26 = arith.maximumf %24, %25 : vector<8x128xf32>
    %27 = math.rsqrt %26 : vector<8x128xf32>
    %28 = arith.mulf %14, %27 : vector<8x128xf32>
    %c0_18 = arith.constant 0 : index
    %c0_19 = arith.constant 0 : index
    %29 = vector.load %arg7[%c0_18, %c0_19] : memref<8x128xf32, #tpu.memory_space<vmem>>, vector<8x128xf32>
    tpu.vector_store %arg7[%c0_18, %c0_19], %28 {strides = array<i32>} : memref<8x128xf32, #tpu.memory_space<vmem>>, vector<8x128xf32>,
    return
  }
  func.func @transform_0(%arg0: i32) -> (i32, i32) {
    %c0_i32 = arith.constant 0 : i32
    %c0_i32_0 = arith.constant 0 : i32
    return %arg0, %c0_i32 : i32, i32
  }
  func.func @transform_1(%arg0: i32) -> (i32, i32) {
    %c0_i32 = arith.constant 0 : i32
    %c0_i32_0 = arith.constant 0 : i32
    %c0_i32_1 = arith.constant 0 : i32
    return %c0_i32, %c0_i32_0 : i32, i32
  }
  func.func @transform_2(%arg0: i32) -> (i32, i32) {
    %c0_i32 = arith.constant 0 : i32
    %c0_i32_0 = arith.constant 0 : i32
    %c0_i32_1 = arith.constant 0 : i32
    return %c0_i32, %c0_i32_0 : i32, i32
  }
  func.func @transform_3(%arg0: i32) -> (i32, i32) {
    %c0_i32 = arith.constant 0 : i32
    %c0_i32_0 = arith.constant 0 : i32
    %c0_i32_1 = arith.constant 0 : i32
    return %c0_i32, %c0_i32_0 : i32, i32
  }
  func.func @transform_4(%arg0: i32) -> (i32, i32) {
    %c0_i32 = arith.constant 0 : i32
    %c0_i32_0 = arith.constant 0 : i32
    %c0_i32_1 = arith.constant 0 : i32
    return %c0_i32, %c0_i32_0 : i32, i32
  }
  func.func @transform_5(%arg0: i32) -> (i32, i32) {
    %c0_i32 = arith.constant 0 : i32
    %c0_i32_0 = arith.constant 0 : i32
    %c0_i32_1 = arith.constant 0 : i32
    return %c0_i32, %c0_i32_0 : i32, i32
  }
  func.func @transform_6(%arg0: i32) -> (i32, i32) {
    %c0_i32 = arith.constant 0 : i32
    %c0_i32_0 = arith.constant 0 : i32
    return %arg0, %c0_i32 : i32, i32
  }
}

</mosaic_0001>

<llo_original>
// kernel: tile.13
$region0: #{tile.13}
  #allocation0 [shape = 's32[1]{0}', space=sflag, size = 0x4, scoped, tag = 'scoped memory for tile.13']
  %s0 = inlined_call_operand.vmem [shape: f32[24], index: 0, kind: input, shape index: {}]
  %s1 = inlined_call_operand.vmem [shape: f32[8,24], index: 1, kind: output, shape index: {}]
  // Predicated region
  $region2: #{tile.13} parent=0 // pred_check
    _
  $region3: #{tile.13} parent=0 // pred_check_branch
    %3 = sbr.rel (0) target = $region5
  $region4: #{tile.13} parent=0 // pred_region
    _
  $region5: #{tile.13} parent=0 // pred_fallthru
    _
  %v4 = vld [vmem:[%s0] ss:$0 sm:$0xff]
  %5 = vst [vmem:[%s1] sm:$0xff] %v4

// kernel: tile.14
$region0: #{tile.14}
  %s0 = inlined_call_operand.vmem [shape: f32[8,24], index: 0, kind: input, shape index: {}]
  %s1 = inlined_call_operand.vmem [shape: f32[1,192], index: 1, kind: output, shape index: {}]
  $region1: #{tile.14} parent=0
    #allocation0 [shape = 'u8[8192]{0}', space=vmem, size = 0x2000, scoped, tag = 'scoped mem for output reshape']
    %v2 = vld [vmem:[%s0] sm:$0x1]
    %vm3 = vcmask 195584
    %4 = vst.msk [vmem:[#allocation0] sm:$0x1] %vm3, %v2
    %s5 = scalar_lea.vmem %s0, 5
    %v6 = vld [vmem:[%s5] sm:$0x1]
    %s7 = scalar_lea.vmem %s0, 5
    %v8 = vld [vmem:[%s7] sm:$0x1]
    %vm9 = vcmask 64512
    %v10 = vsel %vm9, %v8, %v6
    %11 = vrot.lane.b32.xlu0 %v10, 120
    %v12 = vpop.permute.xlu0 %11
    %vm13 = vcmask 130048
    %s14 = scalar_lea.vmem [#allocation0], 8
    %15 = vst.msk [vmem:[%s14] sm:$0x1] %vm13, %v12
    %vm16 = vcmask 1048512
    %17 = vst.msk [vmem:[#allocation0] sm:$0x1] %vm16, %v12
    %s18 = scalar_lea.vmem %s0, 4
    %v19 = vld [vmem:[%s18] sm:$0x1]
    %20 = vrot.lane.b32.xlu0 %v19, 96
    %v21 = vpop.permute.xlu0 %20
    %vm22 = vcmask 982784
    %23 = vst.msk [vmem:[#allocation0] sm:$0x1] %vm22, %v21
    %s24 = scalar_lea.vmem %s0, 3
    %v25 = vld [vmem:[%s24] sm:$0x1]
    %26 = vrot.lane.b32.xlu0 %v25, 72
    %v27 = vpop.permute.xlu0 %26
    %vm28 = vcmask 785984
    %29 = vst.msk [vmem:[#allocation0] sm:$0x1] %vm28, %v27
    %s30 = scalar_lea.vmem %s0, 2
    %v31 = vld [vmem:[%s30] sm:$0x1]
    %32 = vrot.lane.b32.xlu0 %v31, 48
    %v33 = vpop.permute.xlu0 %32
    %vm34 = vcmask 589184
    %35 = vst.msk [vmem:[#allocation0] sm:$0x1] %vm34, %v33
    %s36 = scalar_lea.vmem %s0, 7
    %v37 = vld [vmem:[%s36] sm:$0x1]
    %38 = vrot.lane.b32.xlu0 %v37, 40
    %v39 = vpop.permute.xlu0 %38
    %vm40 = vcmask 523584
    %s41 = scalar_lea.vmem [#allocation0], 8
    %42 = vst.msk [vmem:[%s41] sm:$0x1] %vm40, %v39
    %s43 = scalar_lea.vmem %s0, 1
    %v44 = vld [vmem:[%s43] sm:$0x1]
    %45 = vrot.lane.b32.xlu0 %v44, 24
    %v46 = vpop.permute.xlu0 %45
    %vm47 = vcmask 392384
    %48 = vst.msk [vmem:[#allocation0] sm:$0x1] %vm47, %v46
    %s49 = scalar_lea.vmem %s0, 6
    %v50 = vld [vmem:[%s49] sm:$0x1]
    %51 = vrot.lane.b32.xlu0 %v50, 16
    %v52 = vpop.permute.xlu0 %51
    %vm53 = vcmask 326784
    %s54 = scalar_lea.vmem [#allocation0], 8
    %55 = vst.msk [vmem:[%s54] sm:$0x1] %vm53, %v52
    %s57 = sshllo.u32 0, 1
    %v59 = vld [vmem:[#allocation0] sm:%s57]
    %s60 = sshllo.u32 0, 1
    %61 = vst [vmem:[%s1] sm:%s60] %v59
    %s62 = scalar_lea.vmem [#allocation0], 8
    %v63 = vld [vmem:[%s62] sm:%s57]
    %s64 = sshllo.u32 0, 1
    %s65 = scalar_lea.vmem %s1, 1
    %66 = vst [vmem:[%s65] sm:%s64] %v63

// kernel: tile.18
$region0: #{tile.18}
  #allocation0 [shape = 's32[1]{0}', space=sflag, size = 0x4, scoped, tag = 'scoped memory for tile.18']
  %s0 = inlined_call_operand.vmem [shape: f32[16], index: 0, kind: input, shape index: {}]
  %s1 = inlined_call_operand.vmem [shape: f32[8,16], index: 1, kind: output, shape index: {}]
  // Predicated region
  $region2: #{tile.18} parent=0 // pred_check
    _
  $region3: #{tile.18} parent=0 // pred_check_branch
    %3 = sbr.rel (0) target = $region5
  $region4: #{tile.18} parent=0 // pred_region
    _
  $region5: #{tile.18} parent=0 // pred_fallthru
    _
  %v4 = vld [vmem:[%s0] ss:$0 sm:$0xff]
  %5 = vst [vmem:[%s1] sm:$0xff] %v4

// kernel: tile.19
$region0: #{tile.19}
  %s0 = inlined_call_operand.vmem [shape: f32[8,16], index: 0, kind: input, shape index: {}]
  %s1 = inlined_call_operand.vmem [shape: f32[1,128], index: 1, kind: output, shape index: {}]
  $region1: #{tile.19} parent=0
    #allocation0 [shape = 'u8[4096]{0}', space=vmem, size = 0x1000, scoped, tag = 'scoped mem for output reshape']
    %v2 = vld [vmem:[%s0] sm:$0x1]
    %vm3 = vcmask 130048
    %4 = vst.msk [vmem:[#allocation0] sm:$0x1] %vm3, %v2
    %s5 = scalar_lea.vmem %s0, 7
    %v6 = vld [vmem:[%s5] sm:$0x1]
    %7 = vrot.lane.b32.xlu0 %v6, 112
    %v8 = vpop.permute.xlu0 %7
    %vm9 = vcmask 1048448
    %10 = vst.msk [vmem:[#allocation0] sm:$0x1] %vm9, %v8
    %s11 = scalar_lea.vmem %s0, 6
    %v12 = vld [vmem:[%s11] sm:$0x1]
    %13 = vrot.lane.b32.xlu0 %v12, 96
    %v14 = vpop.permute.xlu0 %13
    %vm15 = vcmask 917248
    %16 = vst.msk [vmem:[#allocation0] sm:$0x1] %vm15, %v14
    %s17 = scalar_lea.vmem %s0, 5
    %v18 = vld [vmem:[%s17] sm:$0x1]
    %19 = vrot.lane.b32.xlu0 %v18, 80
    %v20 = vpop.permute.xlu0 %19
    %vm21 = vcmask 786048
    %22 = vst.msk [vmem:[#allocation0] sm:$0x1] %vm21, %v20
    %s23 = scalar_lea.vmem %s0, 4
    %v24 = vld [vmem:[%s23] sm:$0x1]
    %25 = vrot.lane.b32.xlu0 %v24, 64
    %v26 = vpop.permute.xlu0 %25
    %vm27 = vcmask 654848
    %28 = vst.msk [vmem:[#allocation0] sm:$0x1] %vm27, %v26
    %s29 = scalar_lea.vmem %s0, 3
    %v30 = vld [vmem:[%s29] sm:$0x1]
    %31 = vrot.lane.b32.xlu0 %v30, 48
    %v32 = vpop.permute.xlu0 %31
    %vm33 = vcmask 523648
    %34 = vst.msk [vmem:[#allocation0] sm:$0x1] %vm33, %v32
    %s35 = scalar_lea.vmem %s0, 2
    %v36 = vld [vmem:[%s35] sm:$0x1]
    %37 = vrot.lane.b32.xlu0 %v36, 32
    %v38 = vpop.permute.xlu0 %37
    %vm39 = vcmask 392448
    %40 = vst.msk [vmem:[#allocation0] sm:$0x1] %vm39, %v38
    %s41 = scalar_lea.vmem %s0, 1
    %v42 = vld [vmem:[%s41] sm:$0x1]
    %43 = vrot.lane.b32.xlu0 %v42, 16
    %v44 = vpop.permute.xlu0 %43
    %vm45 = vcmask 261248
    %46 = vst.msk [vmem:[#allocation0] sm:$0x1] %vm45, %v44
    %s48 = sshllo.u32 0, 1
    %v50 = vld [vmem:[#allocation0] sm:%s48]
    %s51 = sshllo.u32 0, 1
    %52 = vst [vmem:[%s1] sm:%s51] %v50

// kernel: keypoint_descriptor.1
$region0: #{keypoint_descriptor.1}
  #allocation0 [shape = 'u32[]', space=smem, size = 0x4, offset = 0x4, fixed_abs, tag = 'smem constant byte address 0x4 - core index']
  #allocation1 [shape = 'u32[144,128]{1,0:T(1,128)}', space=vmem, size = 0x12000, scoped, tag = 'internal scratch']
  %s0 = inlined_call_operand.vmem [shape: f32[29,256], index: 0, kind: input, shape index: {}]
  %s1 = inlined_call_operand.vmem [shape: bf16[256,192], index: 1, kind: input, shape index: {}]
  %s2 = inlined_call_operand.vmem [shape: f32[1,192], index: 2, kind: input, shape index: {}]
  %s3 = inlined_call_operand.vmem [shape: bf16[192,128], index: 3, kind: input, shape index: {}]
  %s4 = inlined_call_operand.vmem [shape: f32[1,128], index: 4, kind: input, shape index: {}]
  %s5 = inlined_call_operand.vmem [shape: bf16[128,128], index: 5, kind: input, shape index: {}]
  %s6 = inlined_call_operand.vmem [shape: f32[29,128], index: 6, kind: output, shape index: {}]
  %s7 = sld [smem:[#allocation0]]
  $region57: #{keypoint_descriptor.1} parent=0
    _
  %s9 = ssub.s32 1, %s7
  %s10 = scalar_select 0, %s9, %s7
  loop: start=0, step=1, limit=6
  $region2: #{keypoint_descriptor.1} parent=0 // loop_pre_header
    _
  $region3: #{keypoint_descriptor.1} parent=0 // loop_header
    %s12 = sphi 0, %s16
    %p13 = scmp.ge.s32.totalorder %s12, 6
    %s22 = sphi 0, %s24
    %s25 = sphi 0, %s22
    %s26 = sphi 0, %s25
    %s42 = sphi 0, %s26
    %s46 = sphi 0, %s46
    %s48 = sphi 0, %s46
    %s49 = sphi 0, %s48
    %s63 = sphi 0, %s49
    %s67 = sphi 0, %s67
    %s69 = sphi 0, %s67
    %s70 = sphi 0, %s69
    %s84 = sphi 0, %s70
    %s88 = sphi 0, %s88
    %s90 = sphi 0, %s88
    %s91 = sphi 0, %s90
    %s105 = sphi 0, %s91
    %s109 = sphi 0, %s109
    %s111 = sphi 0, %s109
    %s112 = sphi 0, %s111
    %s126 = sphi 0, %s112
    %s130 = sphi 0, %s130
    %s132 = sphi 0, %s130
    %s133 = sphi 0, %s132
    %s147 = sphi 0, %s133
    %s153 = sphi 0, %s155
    %s156 = sphi 0, %s153
    %s157 = sphi 0, %s156
    %s173 = sphi 0, %s157
  $region4: #{keypoint_descriptor.1} parent=0 // loop_header_branch
    %15 = sbr.rel (%p13) target = $region8
  $region5: #{keypoint_descriptor.1} parent=0 // loop_body
    %s17 = ssub.s32 %s12, 1
    %s18 = ssub.s32 %s12, 2
    %s19 = sadd.s32 %s12, 1
    %s20 = ssub.s32 %s12, %s19
    %p21 = scmp.eq.s32.totalorder %s20, 0
    %s23 = sadd.s32 %s22, 1
    %s24 = scalar_select %p21, %s22, %s23
    %p27 = pneg %p21
    %p28 = scmp.eq.s32.totalorder %s12, 3
    %p29 = por %p27, %p28
    %p30 = scmp.ne.s32.totalorder %s22, %s25
    %p31 = scmp.eq.s32.totalorder %s12, 0
    %p32 = por %p30, %p31
    %p33 = scmp.ne.s32.totalorder %s22, %s25
    %p34 = scmp.eq.s32.totalorder %s17, 3
    %p35 = por %p33, %p34
    %p36 = scmp.ne.s32.totalorder %s25, %s26
    %p37 = scmp.eq.s32.totalorder %s17, 0
    %p38 = por %p36, %p37
    %p39 = scmp.ne.s32.totalorder %s25, %s26
    %p40 = scmp.eq.s32.totalorder %s18, 3
    %p41 = por %p39, %p40
    %p43 = scmp.ne.s32.totalorder %s26, %s42
    %p44 = scmp.eq.s32.totalorder %s18, 0
    %p45 = por %p43, %p44
    %s47 = sadd.s32 %s46, 1
    %p50 = scmp.eq.s32.totalorder %s12, 3
    %p51 = scmp.ne.s32.totalorder %s46, %s48
    %p52 = scmp.eq.s32.totalorder %s12, 0
    %p53 = por %p51, %p52
    %p54 = scmp.ne.s32.totalorder %s46, %s48
    %p55 = scmp.eq.s32.totalorder %s17, 3
    %p56 = por %p54, %p55
    %p57 = scmp.ne.s32.totalorder %s48, %s49
    %p58 = scmp.eq.s32.totalorder %s17, 0
    %p59 = por %p57, %p58
    %p60 = scmp.ne.s32.totalorder %s48, %s49
    %p61 = scmp.eq.s32.totalorder %s18, 3
    %p62 = por %p60, %p61
    %p64 = scmp.ne.s32.totalorder %s49, %s63
    %p65 = scmp.eq.s32.totalorder %s18, 0
    %p66 = por %p64, %p65
    %s68 = sadd.s32 %s67, 1
    %p71 = scmp.eq.s32.totalorder %s12, 3
    %p72 = scmp.ne.s32.totalorder %s67, %s69
    %p73 = scmp.eq.s32.totalorder %s12, 0
    %p74 = por %p72, %p73
    %p75 = scmp.ne.s32.totalorder %s67, %s69
    %p76 = scmp.eq.s32.totalorder %s17, 3
    %p77 = por %p75, %p76
    %p78 = scmp.ne.s32.totalorder %s69, %s70
    %p79 = scmp.eq.s32.totalorder %s17, 0
    %p80 = por %p78, %p79
    %p81 = scmp.ne.s32.totalorder %s69, %s70
    %p82 = scmp.eq.s32.totalorder %s18, 3
    %p83 = por %p81, %p82
    %p85 = scmp.ne.s32.totalorder %s70, %s84
    %p86 = scmp.eq.s32.totalorder %s18, 0
    %p87 = por %p85, %p86
    %s89 = sadd.s32 %s88, 1
    %p92 = scmp.eq.s32.totalorder %s12, 3
    %p93 = scmp.ne.s32.totalorder %s88, %s90
    %p94 = scmp.eq.s32.totalorder %s12, 0
    %p95 = por %p93, %p94
    %p96 = scmp.ne.s32.totalorder %s88, %s90
    %p97 = scmp.eq.s32.totalorder %s17, 3
    %p98 = por %p96, %p97
    %p99 = scmp.ne.s32.totalorder %s90, %s91
    %p100 = scmp.eq.s32.totalorder %s17, 0
    %p101 = por %p99, %p100
    %p102 = scmp.ne.s32.totalorder %s90, %s91
    %p103 = scmp.eq.s32.totalorder %s18, 3
    %p104 = por %p102, %p103
    %p106 = scmp.ne.s32.totalorder %s91, %s105
    %p107 = scmp.eq.s32.totalorder %s18, 0
    %p108 = por %p106, %p107
    %s110 = sadd.s32 %s109, 1
    %p113 = scmp.eq.s32.totalorder %s12, 3
    %p114 = scmp.ne.s32.totalorder %s109, %s111
    %p115 = scmp.eq.s32.totalorder %s12, 0
    %p116 = por %p114, %p115
    %p117 = scmp.ne.s32.totalorder %s109, %s111
    %p118 = scmp.eq.s32.totalorder %s17, 3
    %p119 = por %p117, %p118
    %p120 = scmp.ne.s32.totalorder %s111, %s112
    %p121 = scmp.eq.s32.totalorder %s17, 0
    %p122 = por %p120, %p121
    %p123 = scmp.ne.s32.totalorder %s111, %s112
    %p124 = scmp.eq.s32.totalorder %s18, 3
    %p125 = por %p123, %p124
    %p127 = scmp.ne.s32.totalorder %s112, %s126
    %p128 = scmp.eq.s32.totalorder %s18, 0
    %p129 = por %p127, %p128
    %s131 = sadd.s32 %s130, 1
    %p134 = scmp.eq.s32.totalorder %s12, 3
    %p135 = scmp.ne.s32.totalorder %s130, %s132
    %p136 = scmp.eq.s32.totalorder %s12, 0
    %p137 = por %p135, %p136
    %p138 = scmp.ne.s32.totalorder %s130, %s132
    %p139 = scmp.eq.s32.totalorder %s17, 3
    %p140 = por %p138, %p139
    %p141 = scmp.ne.s32.totalorder %s132, %s133
    %p142 = scmp.eq.s32.totalorder %s17, 0
    %p143 = por %p141, %p142
    %p144 = scmp.ne.s32.totalorder %s132, %s133
    %p145 = scmp.eq.s32.totalorder %s18, 3
    %p146 = por %p144, %p145
    %p148 = scmp.ne.s32.totalorder %s133, %s147
    %p149 = scmp.eq.s32.totalorder %s18, 0
    %p150 = por %p148, %p149
    %s151 = ssub.s32 %s12, %s19
    %p152 = scmp.eq.s32.totalorder %s151, 0
    %s154 = sadd.s32 %s153, 1
    %s155 = scalar_select %p152, %s153, %s154
    %p158 = pneg %p152
    %p159 = scmp.eq.s32.totalorder %s12, 3
    %p160 = por %p158, %p159
    %p161 = scmp.ne.s32.totalorder %s153, %s156
    %p162 = scmp.eq.s32.totalorder %s12, 0
    %p163 = por %p161, %p162
    %p164 = scmp.ne.s32.totalorder %s153, %s156
    %p165 = scmp.eq.s32.totalorder %s17, 3
    %p166 = por %p164, %p165
    %p167 = scmp.ne.s32.totalorder %s156, %s157
    %p168 = scmp.eq.s32.totalorder %s17, 0
    %p169 = por %p167, %p168
    %p170 = scmp.ne.s32.totalorder %s156, %s157
    %p171 = scmp.eq.s32.totalorder %s18, 3
    %p172 = por %p170, %p171
    %p174 = scmp.ne.s32.totalorder %s157, %s173
    %p175 = scmp.eq.s32.totalorder %s18, 0
    %p176 = por %p174, %p175
    %p177 = scmp.le.s32.totalorder 1, %s12
    %p178 = scmp.lt.s32.totalorder %s12, 5
    %p179 = pnand %p177, %p178
    %p180 = pneg %p179
    // Predicated region
    $region9: #{keypoint_descriptor.1} parent=5 // pred_check
      _
    $region10: #{keypoint_descriptor.1} parent=5 // pred_check_branch
      %182 = sbr.rel (%p179) target = $region12
    $region11: #{keypoint_descriptor.1} parent=5 // pred_region
      %s183 = ssub.s32 %s12, 1
      // Predicated region
      $region13: #{keypoint_descriptor.1} parent=11 // pred_check
        %p184 = pneg %p59
      $region14: #{keypoint_descriptor.1} parent=11 // pred_check_branch
        %186 = sbr.rel (%p184) target = $region16
      $region15: #{keypoint_descriptor.1} parent=11 // pred_region
        _
      $region16: #{keypoint_descriptor.1} parent=11 // pred_fallthru
        _
      // Predicated region
      $region17: #{keypoint_descriptor.1} parent=11 // pred_check
        %p187 = pneg %p80
      $region18: #{keypoint_descriptor.1} parent=11 // pred_check_branch
        %189 = sbr.rel (%p187) target = $region20
      $region19: #{keypoint_descriptor.1} parent=11 // pred_region
        _
      $region20: #{keypoint_descriptor.1} parent=11 // pred_fallthru
        _
      // Predicated region
      $region21: #{keypoint_descriptor.1} parent=11 // pred_check
        %p190 = pneg %p101
      $region22: #{keypoint_descriptor.1} parent=11 // pred_check_branch
        %192 = sbr.rel (%p190) target = $region24
      $region23: #{keypoint_descriptor.1} parent=11 // pred_region
        _
      $region24: #{keypoint_descriptor.1} parent=11 // pred_fallthru
        _
      // Predicated region
      $region25: #{keypoint_descriptor.1} parent=11 // pred_check
        %p193 = pneg %p122
      $region26: #{keypoint_descriptor.1} parent=11 // pred_check_branch
        %195 = sbr.rel (%p193) target = $region28
      $region27: #{keypoint_descriptor.1} parent=11 // pred_region
        _
      $region28: #{keypoint_descriptor.1} parent=11 // pred_fallthru
        _
      // Predicated region
      $region29: #{keypoint_descriptor.1} parent=11 // pred_check
        %p196 = pneg %p143
      $region30: #{keypoint_descriptor.1} parent=11 // pred_check_branch
        %198 = sbr.rel (%p196) target = $region32
      $region31: #{keypoint_descriptor.1} parent=11 // pred_region
        _
      $region32: #{keypoint_descriptor.1} parent=11 // pred_fallthru
        _
    $region12: #{keypoint_descriptor.1} parent=5 // pred_fallthru
      _
    %p199 = scmp.lt.s32.totalorder %s12, 4
    // Predicated region
    $region33: #{keypoint_descriptor.1} parent=5 // pred_check
      %p200 = pneg %p199
    $region34: #{keypoint_descriptor.1} parent=5 // pred_check_branch
      %202 = sbr.rel (%p200) target = $region36
    $region35: #{keypoint_descriptor.1} parent=5 // pred_region
      // Predicated region
      $region37: #{keypoint_descriptor.1} parent=35 // pred_check
        %p203 = pneg %p32
      $region38: #{keypoint_descriptor.1} parent=35 // pred_check_branch
        %205 = sbr.rel (%p203) target = $region40
      $region39: #{keypoint_descriptor.1} parent=35 // pred_region
        %p206 = scmp.lt.s32.totalorder %s12, 3
        %s207 = scalar_select %p206, %s12, 3
        %s208 = smul.addr %s207, 2
        %s209 = smul.addr %s208, 8
        %s210 = scalar_lea.vmem %s0, %s209
      $region40: #{keypoint_descriptor.1} parent=35 // pred_fallthru
        _
    $region36: #{keypoint_descriptor.1} parent=5 // pred_fallthru
      _
    %p211 = scmp.le.s32.totalorder 1, %s12
    %p212 = scmp.lt.s32.totalorder %s12, 5
    %p213 = pnand %p211, %p212
    %p214 = pneg %p213
    // Predicated region
    $region41: #{keypoint_descriptor.1} parent=5 // pred_check
      _
    $region42: #{keypoint_descriptor.1} parent=5 // pred_check_branch
      %216 = sbr.rel (%p213) target = $region44
    $region43: #{keypoint_descriptor.1} parent=5 // pred_region
      %s217 = ssub.s32 %s12, 1
      %p218 = scmp.lt.s32.totalorder %s17, 3
      %s219 = scalar_select %p218, %s17, 3
      %s220 = smul.addr %s219, 2
      %s221 = smul.addr %s220, 8
      %s222 = scalar_lea.vmem %s0, %s221
      %p223 = pneg %p38
      %p224 = pneg %p35
      %p225 = pneg %p59
      %p226 = pneg %p56
      %p227 = pneg %p80
      %p228 = pneg %p77
      %p229 = pneg %p101
      %p230 = pneg %p98
      %p231 = pneg %p122
      %p232 = pneg %p119
      %p233 = pneg %p143
      %p234 = pneg %p140
      %p235 = pneg %p169
      %p236 = pneg %p166
      %p237 = scmp.lt.s32.totalorder %s17, 3
      %s238 = scalar_select %p237, %s17, 3
      %s239 = smul.addr %s238, 8
      %s240 = scalar_lea.vmem %s6, %s239
      %p241 = scmp.lt.s32.totalorder %s17, 3
      %s242 = scalar_select %p241, %s17, 3
      %s243 = smul.addr %s242, 2
      %s244 = smul.addr %s243, 8
      %s245 = scalar_lea.vmem %s0, %s244
      %p246 = scmp.lt.s32.totalorder %s17, 3
      %s247 = scalar_select %p246, %s17, 3
      %s248 = smul.addr %s247, 8
      %s249 = scalar_lea.vmem %s6, %s248
      %v251 = vld [vmem:[%s245] sm:$0xff]
      %v252 = vld [vmem:[%s245 + $0x8] sm:$0xff]
      %v253 = vpack.c.bf16 %v251, %v251
      %v254 = vpack.c.bf16 %v252, %v252
      %v255 = vld [vmem:[%s1] sm:$0xff]
      %v256 = vld [vmem:[%s1 + $0x8] sm:$0xff]
      %v257 = vld [vmem:[%s1 + $0x10] sm:$0xff]
      %v258 = vld [vmem:[%s1 + $0x18] sm:$0xff]
      %v259 = vld [vmem:[%s1 + $0x20] sm:$0xff]
      %v260 = vld [vmem:[%s1 + $0x28] sm:$0xff]
      %v261 = vld [vmem:[%s1 + $0x30] sm:$0xff]
      %v262 = vld [vmem:[%s1 + $0x38] sm:$0xff]
      %v263 = vld [vmem:[%s1 + $0x40] sm:$0xff]
      %v264 = vld [vmem:[%s1 + $0x48] sm:$0xff]
      %v265 = vld [vmem:[%s1 + $0x50] sm:$0xff]
      %v266 = vld [vmem:[%s1 + $0x58] sm:$0xff]
      %v267 = vld [vmem:[%s1 + $0x60] sm:$0xff]
      %v268 = vld [vmem:[%s1 + $0x68] sm:$0xff]
      %v269 = vld [vmem:[%s1 + $0x70] sm:$0xff]
      %v270 = vld [vmem:[%s1 + $0x78] sm:$0xff]
      %v271 = vld [vmem:[%s1 + $0x80] sm:$0xff]
      %v272 = vld [vmem:[%s1 + $0x88] sm:$0xff]
      %v273 = vld [vmem:[%s1 + $0x90] sm:$0xff]
      %v274 = vld [vmem:[%s1 + $0x98] sm:$0xff]
      %v275 = vld [vmem:[%s1 + $0xa0] sm:$0xff]
      %v276 = vld [vmem:[%s1 + $0xa8] sm:$0xff]
      %v277 = vld [vmem:[%s1 + $0xb0] sm:$0xff]
      %v278 = vld [vmem:[%s1 + $0xb8] sm:$0xff]
      %v279 = vld [vmem:[%s1 + $0xc0] sm:$0xff]
      %v280 = vld [vmem:[%s1 + $0xc8] sm:$0xff]
      %v281 = vld [vmem:[%s1 + $0xd0] sm:$0xff]
      %v282 = vld [vmem:[%s1 + $0xd8] sm:$0xff]
      %v283 = vld [vmem:[%s1 + $0xe0] sm:$0xff]
      %v284 = vld [vmem:[%s1 + $0xe8] sm:$0xff]
      %v285 = vld [vmem:[%s1 + $0xf0] sm:$0xff]
      %v286 = vld [vmem:[%s1 + $0xf8] sm:$0xff]
      %v287 = vld [vmem:[%s2] sm:$0x3]
      %v289 = vlaneseq
      %v290 = vshrl.u32 %v289, 7
      %v291 = vsub.s32 0, %v290
      %v292 = vrot.slane %v287, %v291
      %v293 = vlaneseq
      %v294 = vshrl.u32 %v293, 7
      %v295 = vsub.s32 1, %v294
      %v296 = vrot.slane %v287, %v295
      %v331 = vunpack.c.l.b16 %v255
      %v332 = vunpack.c.h.b16 %v255
      %v333 = vunpack.c.l.b16 %v256
      %v334 = vunpack.c.h.b16 %v256
      %v335 = vunpack.c.l.b16 %v257
      %v336 = vunpack.c.h.b16 %v257
      %v337 = vunpack.c.l.b16 %v258
      %v338 = vunpack.c.h.b16 %v258
      %v339 = vunpack.c.l.b16 %v259
      %v340 = vunpack.c.h.b16 %v259
      %v341 = vunpack.c.l.b16 %v260
      %v342 = vunpack.c.h.b16 %v260
      %v343 = vunpack.c.l.b16 %v261
      %v344 = vunpack.c.h.b16 %v261
      %v345 = vunpack.c.l.b16 %v262
      %v346 = vunpack.c.h.b16 %v262
      %v347 = vunpack.c.l.b16 %v263
      %v348 = vunpack.c.h.b16 %v263
      %v349 = vunpack.c.l.b16 %v264
      %v350 = vunpack.c.h.b16 %v264
      %v351 = vunpack.c.l.b16 %v265
      %v352 = vunpack.c.h.b16 %v265
      %v353 = vunpack.c.l.b16 %v266
      %v354 = vunpack.c.h.b16 %v266
      %v355 = vunpack.c.l.b16 %v267
      %v356 = vunpack.c.h.b16 %v267
      %v357 = vunpack.c.l.b16 %v268
      %v358 = vunpack.c.h.b16 %v268
      %v359 = vunpack.c.l.b16 %v269
      %v360 = vunpack.c.h.b16 %v269
      %v361 = vunpack.c.l.b16 %v270
      %v362 = vunpack.c.h.b16 %v270
      %v363 = vunpack.c.l.b16 %v271
      %v364 = vunpack.c.h.b16 %v271
      %v365 = vunpack.c.l.b16 %v272
      %v366 = vunpack.c.h.b16 %v272
      %v367 = vunpack.c.l.b16 %v273
      %v368 = vunpack.c.h.b16 %v273
      %v369 = vunpack.c.l.b16 %v274
      %v370 = vunpack.c.h.b16 %v274
      %v371 = vunpack.c.l.b16 %v275
      %v372 = vunpack.c.h.b16 %v275
      %v373 = vunpack.c.l.b16 %v276
      %v374 = vunpack.c.h.b16 %v276
      %v375 = vunpack.c.l.b16 %v277
      %v376 = vunpack.c.h.b16 %v277
      %v377 = vunpack.c.l.b16 %v278
      %v378 = vunpack.c.h.b16 %v278
      %v379 = vunpack.c.l.b16 %v279
      %v380 = vunpack.c.h.b16 %v279
      %v381 = vunpack.c.l.b16 %v280
      %v382 = vunpack.c.h.b16 %v280
      %v383 = vunpack.c.l.b16 %v281
      %v384 = vunpack.c.h.b16 %v281
      %v385 = vunpack.c.l.b16 %v282
      %v386 = vunpack.c.h.b16 %v282
      %v387 = vunpack.c.l.b16 %v283
      %v388 = vunpack.c.h.b16 %v283
      %v389 = vunpack.c.l.b16 %v284
      %v390 = vunpack.c.h.b16 %v284
      %v391 = vunpack.c.l.b16 %v285
      %v392 = vunpack.c.h.b16 %v285
      %v393 = vunpack.c.l.b16 %v286
      %v394 = vunpack.c.h.b16 %v286
      %v395 = vpack.c.b16 %v333, %v331
      %v396 = vpack.c.b16 %v334, %v332
      %v397 = vpack.c.b16 %v337, %v335
      %v398 = vpack.c.b16 %v338, %v336
      %v399 = vpack.c.b16 %v341, %v339
      %v400 = vpack.c.b16 %v342, %v340
      %v401 = vpack.c.b16 %v345, %v343
      %v402 = vpack.c.b16 %v346, %v344
      %v403 = vpack.c.b16 %v349, %v347
      %v404 = vpack.c.b16 %v350, %v348
      %v405 = vpack.c.b16 %v353, %v351
      %v406 = vpack.c.b16 %v354, %v352
      %v407 = vpack.c.b16 %v357, %v355
      %v408 = vpack.c.b16 %v358, %v356
      %v409 = vpack.c.b16 %v361, %v359
      %v410 = vpack.c.b16 %v362, %v360
      %v411 = vpack.c.b16 %v365, %v363
      %v412 = vpack.c.b16 %v366, %v364
      %v413 = vpack.c.b16 %v369, %v367
      %v414 = vpack.c.b16 %v370, %v368
      %v415 = vpack.c.b16 %v373, %v371
      %v416 = vpack.c.b16 %v374, %v372
      %v417 = vpack.c.b16 %v377, %v375
      %v418 = vpack.c.b16 %v378, %v376
      %v419 = vpack.c.b16 %v381, %v379
      %v420 = vpack.c.b16 %v382, %v380
      %v421 = vpack.c.b16 %v385, %v383
      %v422 = vpack.c.b16 %v386, %v384
      %v423 = vpack.c.b16 %v389, %v387
      %v424 = vpack.c.b16 %v390, %v388
      %v425 = vpack.c.b16 %v393, %v391
      %v426 = vpack.c.b16 %v394, %v392
      %459 = vmatprep.subr.bf16.mxu0 %v396
      %460 = vmatpush1.bf16.msra.mxu0 %v395
      %461 = vmatprep.subr.bf16.mxu0 %v398
      %462 = vmatpush1.bf16.msra.mxu0 %v397
      %463 = vmatprep.subr.bf16.mxu0 %v400
      %464 = vmatpush1.bf16.msra.mxu0 %v399
      %465 = vmatprep.subr.bf16.mxu0 %v402
      %466 = vmatpush1.bf16.msra.mxu0 %v401
      %467 = vmatprep.subr.bf16.mxu0 %v404
      %468 = vmatpush1.bf16.msra.mxu0 %v403
      %469 = vmatprep.subr.bf16.mxu0 %v406
      %470 = vmatpush1.bf16.msra.mxu0 %v405
      %471 = vmatprep.subr.bf16.mxu0 %v408
      %472 = vmatpush1.bf16.msra.mxu0 %v407
      %473 = vmatprep.subr.bf16.mxu0 %v410
      %474 = vmatpush1.bf16.msra.mxu0 %v409
      %475 = vmatprep.subr.bf16.mxu0 %v412
      %476 = vmatpush1.bf16.msra.mxu0 %v411
      %477 = vmatprep.subr.bf16.mxu0 %v414
      %478 = vmatpush1.bf16.msra.mxu0 %v413
      %479 = vmatprep.subr.bf16.mxu0 %v416
      %480 = vmatpush1.bf16.msra.mxu0 %v415
      %481 = vmatprep.subr.bf16.mxu0 %v418
      %482 = vmatpush1.bf16.msra.mxu0 %v417
      %483 = vmatprep.subr.bf16.mxu0 %v420
      %484 = vmatpush1.bf16.msra.mxu0 %v419
      %485 = vmatprep.subr.bf16.mxu0 %v422
      %486 = vmatpush1.bf16.msra.mxu0 %v421
      %487 = vmatprep.subr.bf16.mxu0 %v424
      %488 = vmatpush1.bf16.msra.mxu0 %v423
      %489 = vmatprep.subr.bf16.mxu0 %v426
      %490 = vmatpush1.bf16.msra.mxu0 %v425
      %491 = vmatprep.mubr.bf16.mxu0 %v254
      %492 = vmatmul.mubr.bf16.gmra.mrb[0].mxu0 %v253
      %v493 = vpop.f32.mrb[0].mxu0
      %v494 = vadd.f32 %v292, %v493
      %v495 = vpop.f32.mrb[0].mxu0
      %v496 = vadd.f32 %v296, %v495
      %v497 = vpop.f32.mrb[0].mxu0
      %v498 = vpop.f32.mrb[0].mxu0
      %499 = vdwg.mxu0
      %v500 = vmax.f32 %v494, 0.0
      %v501 = vmax.f32 %v496, 0.0
      %v502 = vpack.c.bf16 %v500, %v500
      %v503 = vpack.c.bf16 %v501, %v501
      %v504 = vld [vmem:[%s3] sm:$0xf]
      %v505 = vld [vmem:[%s3 + $0x4] sm:$0xf]
      %v506 = vld [vmem:[%s3 + $0x8] sm:$0xf]
      %v507 = vld [vmem:[%s3 + $0xc] sm:$0xf]
      %v508 = vld [vmem:[%s3 + $0x10] sm:$0xf]
      %v509 = vld [vmem:[%s3 + $0x14] sm:$0xf]
      %v510 = vld [vmem:[%s3 + $0x18] sm:$0xf]
      %v511 = vld [vmem:[%s3 + $0x1c] sm:$0xf]
      %v512 = vld [vmem:[%s3 + $0x20] sm:$0xf]
      %v513 = vld [vmem:[%s3 + $0x24] sm:$0xf]
      %v514 = vld [vmem:[%s3 + $0x28] sm:$0xf]
      %v515 = vld [vmem:[%s3 + $0x2c] sm:$0xf]
      %v516 = vld [vmem:[%s3 + $0x30] sm:$0xf]
      %v517 = vld [vmem:[%s3 + $0x34] sm:$0xf]
      %v518 = vld [vmem:[%s3 + $0x38] sm:$0xf]
      %v519 = vld [vmem:[%s3 + $0x3c] sm:$0xf]
      %v520 = vld [vmem:[%s3 + $0x40] sm:$0xf]
      %v521 = vld [vmem:[%s3 + $0x44] sm:$0xf]
      %v522 = vld [vmem:[%s3 + $0x48] sm:$0xf]
      %v523 = vld [vmem:[%s3 + $0x4c] sm:$0xf]
      %v524 = vld [vmem:[%s3 + $0x50] sm:$0xf]
      %v525 = vld [vmem:[%s3 + $0x54] sm:$0xf]
      %v526 = vld [vmem:[%s3 + $0x58] sm:$0xf]
      %v527 = vld [vmem:[%s3 + $0x5c] sm:$0xf]
      %v528 = vld [vmem:[%s4] sm:$0x1]
      %v530 = vlaneseq
      %v531 = vshrl.u32 %v530, 7
      %v532 = vsub.s32 0, %v531
      %v533 = vrot.slane %v528, %v532
      %v559 = vunpack.c.l.b16 %v504
      %v560 = vunpack.c.l.b16 %v505
      %v561 = vunpack.c.l.b16 %v506
      %v562 = vunpack.c.l.b16 %v507
      %v563 = vunpack.c.l.b16 %v508
      %v564 = vunpack.c.l.b16 %v509
      %v565 = vunpack.c.l.b16 %v510
      %v566 = vunpack.c.l.b16 %v511
      %v567 = vunpack.c.l.b16 %v512
      %v568 = vunpack.c.l.b16 %v513
      %v569 = vunpack.c.l.b16 %v514
      %v570 = vunpack.c.l.b16 %v515
      %v571 = vunpack.c.l.b16 %v516
      %v572 = vunpack.c.l.b16 %v517
      %v573 = vunpack.c.l.b16 %v518
      %v574 = vunpack.c.l.b16 %v519
      %v575 = vunpack.c.l.b16 %v520
      %v576 = vunpack.c.l.b16 %v521
      %v577 = vunpack.c.l.b16 %v522
      %v578 = vunpack.c.l.b16 %v523
      %v579 = vunpack.c.l.b16 %v524
      %v580 = vunpack.c.l.b16 %v525
      %v581 = vunpack.c.l.b16 %v526
      %v582 = vunpack.c.l.b16 %v527
      %v583 = vpack.c.b16 %v560, %v559
      %v584 = vpack.c.b16 %v562, %v561
      %v585 = vpack.c.b16 %v564, %v563
      %v586 = vpack.c.b16 %v566, %v565
      %v587 = vpack.c.b16 %v568, %v567
      %v588 = vpack.c.b16 %v570, %v569
      %v589 = vpack.c.b16 %v572, %v571
      %v590 = vpack.c.b16 %v574, %v573
      %v591 = vpack.c.b16 %v576, %v575
      %v592 = vpack.c.b16 %v578, %v577
      %v593 = vpack.c.b16 %v580, %v579
      %v594 = vpack.c.b16 %v582, %v581
      %vm607 = vcmask 523264
      %v609 = vsel %vm607, %v503, 0
      %611 = vmatprep.subr.bf16.mxu0 0
      %612 = vmatpush1.bf16.msra.mxu0 %v583
      %613 = vmatprep.subr.bf16.mxu0 0
      %614 = vmatpush1.bf16.msra.mxu0 %v584
      %615 = vmatprep.subr.bf16.mxu0 0
      %616 = vmatpush1.bf16.msra.mxu0 %v585
      %617 = vmatprep.subr.bf16.mxu0 0
      %618 = vmatpush1.bf16.msra.mxu0 %v586
      %619 = vmatprep.subr.bf16.mxu0 0
      %620 = vmatpush1.bf16.msra.mxu0 %v587
      %621 = vmatprep.subr.bf16.mxu0 0
      %622 = vmatpush1.bf16.msra.mxu0 %v588
      %623 = vmatprep.subr.bf16.mxu0 0
      %624 = vmatpush1.bf16.msra.mxu0 %v589
      %625 = vmatprep.subr.bf16.mxu0 0
      %626 = vmatpush1.bf16.msra.mxu0 %v590
      %627 = vmatprep.subr.bf16.mxu0 0
      %628 = vmatpush1.bf16.msra.mxu0 %v591
      %629 = vmatprep.subr.bf16.mxu0 0
      %630 = vmatpush1.bf16.msra.mxu0 %v592
      %631 = vmatprep.subr.bf16.mxu0 0
      %632 = vmatpush1.bf16.msra.mxu0 %v593
      %633 = vmatprep.subr.bf16.mxu0 0
      %634 = vmatpush1.bf16.msra.mxu0 %v594
      %635 = vmatprep.subr.bf16.mxu0 0
      %636 = vmatpush1.bf16.msra.mxu0 0
      %637 = vmatprep.subr.bf16.mxu0 0
      %638 = vmatpush1.bf16.msra.mxu0 0
      %639 = vmatprep.subr.bf16.mxu0 0
      %640 = vmatpush1.bf16.msra.mxu0 0
      %641 = vmatprep.subr.bf16.mxu0 0
      %642 = vmatpush1.bf16.msra.mxu0 0
      %643 = vmatprep.mubr.bf16.mxu0 %v609
      %644 = vmatmul.mubr.bf16.gmra.mrb[0].mxu0 %v502
      %v645 = vpop.f32.mrb[0].mxu0
      %v646 = vadd.f32 %v533, %v645
      %v647 = vpop.f32.mrb[0].mxu0
      %v648 = vpop.f32.mrb[0].mxu0
      %v649 = vpop.f32.mrb[0].mxu0
      %650 = vdwg.mxu0
      %v651 = vmul.f32 %v646, %v646
      %v652 = vpack.c.bf16 %v651, %v651
      %v653 = vunpack.c.l.bf16 %v652
      %v654 = vsub.f32 %v651, %v653
      %v655 = vpack.c.bf16 %v654, %v654
      %v656 = vld [vmem:[%s5] sm:$0xf]
      %v657 = vld [vmem:[%s5 + $0x4] sm:$0xf]
      %v658 = vld [vmem:[%s5 + $0x8] sm:$0xf]
      %v659 = vld [vmem:[%s5 + $0xc] sm:$0xf]
      %v660 = vld [vmem:[%s5 + $0x10] sm:$0xf]
      %v661 = vld [vmem:[%s5 + $0x14] sm:$0xf]
      %v662 = vld [vmem:[%s5 + $0x18] sm:$0xf]
      %v663 = vld [vmem:[%s5 + $0x1c] sm:$0xf]
      %v664 = vld [vmem:[%s5 + $0x20] sm:$0xf]
      %v665 = vld [vmem:[%s5 + $0x24] sm:$0xf]
      %v666 = vld [vmem:[%s5 + $0x28] sm:$0xf]
      %v667 = vld [vmem:[%s5 + $0x2c] sm:$0xf]
      %v668 = vld [vmem:[%s5 + $0x30] sm:$0xf]
      %v669 = vld [vmem:[%s5 + $0x34] sm:$0xf]
      %v670 = vld [vmem:[%s5 + $0x38] sm:$0xf]
      %v671 = vld [vmem:[%s5 + $0x3c] sm:$0xf]
      %v688 = vunpack.c.l.b16 %v656
      %v689 = vunpack.c.l.b16 %v657
      %v690 = vunpack.c.l.b16 %v658
      %v691 = vunpack.c.l.b16 %v659
      %v692 = vunpack.c.l.b16 %v660
      %v693 = vunpack.c.l.b16 %v661
      %v694 = vunpack.c.l.b16 %v662
      %v695 = vunpack.c.l.b16 %v663
      %v696 = vunpack.c.l.b16 %v664
      %v697 = vunpack.c.l.b16 %v665
      %v698 = vunpack.c.l.b16 %v666
      %v699 = vunpack.c.l.b16 %v667
      %v700 = vunpack.c.l.b16 %v668
      %v701 = vunpack.c.l.b16 %v669
      %v702 = vunpack.c.l.b16 %v670
      %v703 = vunpack.c.l.b16 %v671
      %v704 = vpack.c.b16 %v689, %v688
      %v705 = vpack.c.b16 %v691, %v690
      %v706 = vpack.c.b16 %v693, %v692
      %v707 = vpack.c.b16 %v695, %v694
      %v708 = vpack.c.b16 %v697, %v696
      %v709 = vpack.c.b16 %v699, %v698
      %v710 = vpack.c.b16 %v701, %v700
      %v711 = vpack.c.b16 %v703, %v702
      %720 = vmatprep.subr.bf16.mxu0 0
      %721 = vmatpush1.bf16.msra.mxu0 %v704
      %722 = vmatprep.subr.bf16.mxu0 0
      %723 = vmatpush1.bf16.msra.mxu0 %v705
      %724 = vmatprep.subr.bf16.mxu0 0
      %725 = vmatpush1.bf16.msra.mxu0 %v706
      %726 = vmatprep.subr.bf16.mxu0 0
      %727 = vmatpush1.bf16.msra.mxu0 %v707
      %728 = vmatprep.subr.bf16.mxu0 0
      %729 = vmatpush1.bf16.msra.mxu0 %v708
      %730 = vmatprep.subr.bf16.mxu0 0
      %731 = vmatpush1.bf16.msra.mxu0 %v709
      %732 = vmatprep.subr.bf16.mxu0 0
      %733 = vmatpush1.bf16.msra.mxu0 %v710
      %734 = vmatprep.subr.bf16.mxu0 0
      %735 = vmatpush1.bf16.msra.mxu0 %v711
      %736 = vmatprep.subr.bf16.mxu0 0
      %737 = vmatpush1.bf16.msra.mxu0 0
      %738 = vmatprep.subr.bf16.mxu0 0
      %739 = vmatpush1.bf16.msra.mxu0 0
      %740 = vmatprep.subr.bf16.mxu0 0
      %741 = vmatpush1.bf16.msra.mxu0 0
      %742 = vmatprep.subr.bf16.mxu0 0
      %743 = vmatpush1.bf16.msra.mxu0 0
      %744 = vmatprep.subr.bf16.mxu0 0
      %745 = vmatpush1.bf16.msra.mxu0 0
      %746 = vmatprep.subr.bf16.mxu0 0
      %747 = vmatpush1.bf16.msra.mxu0 0
      %748 = vmatprep.subr.bf16.mxu0 0
      %749 = vmatpush1.bf16.msra.mxu0 0
      %750 = vmatprep.subr.bf16.mxu0 0
      %751 = vmatpush1.bf16.msra.mxu0 0
      %752 = vmatprep.mubr.bf16.mxu0 0
      %753 = vmatmul.mubr.bf16.gmra.mrb[0].mxu0 %v655
      %v754 = vpop.f32.mrb[0].mxu0
      %v755 = vadd.f32 0.0, %v754
      %v756 = vpop.f32.mrb[0].mxu0
      %v757 = vpop.f32.mrb[0].mxu0
      %v758 = vpop.f32.mrb[0].mxu0
      %759 = vdwg.mxu0
      %760 = vmatprep.subr.bf16.mxu0 0
      %761 = vmatpush1.bf16.msra.mxu0 %v704
      %762 = vmatprep.subr.bf16.mxu0 0
      %763 = vmatpush1.bf16.msra.mxu0 %v705
      %764 = vmatprep.subr.bf16.mxu0 0
      %765 = vmatpush1.bf16.msra.mxu0 %v706
      %766 = vmatprep.subr.bf16.mxu0 0
      %767 = vmatpush1.bf16.msra.mxu0 %v707
      %768 = vmatprep.subr.bf16.mxu0 0
      %769 = vmatpush1.bf16.msra.mxu0 %v708
      %770 = vmatprep.subr.bf16.mxu0 0
      %771 = vmatpush1.bf16.msra.mxu0 %v709
      %772 = vmatprep.subr.bf16.mxu0 0
      %773 = vmatpush1.bf16.msra.mxu0 %v710
      %774 = vmatprep.subr.bf16.mxu0 0
      %775 = vmatpush1.bf16.msra.mxu0 %v711
      %776 = vmatprep.subr.bf16.mxu0 0
      %777 = vmatpush1.bf16.msra.mxu0 0
      %778 = vmatprep.subr.bf16.mxu0 0
      %779 = vmatpush1.bf16.msra.mxu0 0
      %780 = vmatprep.subr.bf16.mxu0 0
      %781 = vmatpush1.bf16.msra.mxu0 0
      %782 = vmatprep.subr.bf16.mxu0 0
      %783 = vmatpush1.bf16.msra.mxu0 0
      %784 = vmatprep.subr.bf16.mxu0 0
      %785 = vmatpush1.bf16.msra.mxu0 0
      %786 = vmatprep.subr.bf16.mxu0 0
      %787 = vmatpush1.bf16.msra.mxu0 0
      %788 = vmatprep.subr.bf16.mxu0 0
      %789 = vmatpush1.bf16.msra.mxu0 0
      %790 = vmatprep.subr.bf16.mxu0 0
      %791 = vmatpush1.bf16.msra.mxu0 0
      %792 = vmatprep.mubr.bf16.mxu0 0
      %793 = vmatmul.mubr.bf16.gmra.mrb[0].mxu0 %v652
      %v794 = vpop.f32.mrb[0].mxu0
      %v795 = vadd.f32 %v755, %v794
      %v796 = vpop.f32.mrb[0].mxu0
      %v797 = vpop.f32.mrb[0].mxu0
      %v798 = vpop.f32.mrb[0].mxu0
      %799 = vdwg.mxu0
      %v800 = vmax.f32 %v795, 1e-24
      %v801 = vrsqrt.pop %v800
      %v802 = vmul.f32 %v646, %v801
      %803 = vst [vmem:[%s249] sm:$0xff] %v802
      %p804 = scmp.lt.s32.totalorder %s17, 3
      %s805 = scalar_select %p804, %s17, 3
      %s806 = smul.addr %s805, 8
      %s807 = scalar_lea.vmem %s6, %s806
      // Predicated region
      $region45: #{keypoint_descriptor.1} parent=43 // pred_check
        %p808 = pneg %p166
      $region46: #{keypoint_descriptor.1} parent=43 // pred_check_branch
        %810 = sbr.rel (%p808) target = $region48
      $region47: #{keypoint_descriptor.1} parent=43 // pred_region
        _
      $region48: #{keypoint_descriptor.1} parent=43 // pred_fallthru
        _
    $region44: #{keypoint_descriptor.1} parent=5 // pred_fallthru
      _
    %p811 = scmp.le.s32.totalorder 2, %s12
    // Predicated region
    $region49: #{keypoint_descriptor.1} parent=5 // pred_check
      %p812 = pneg %p811
    $region50: #{keypoint_descriptor.1} parent=5 // pred_check_branch
      %814 = sbr.rel (%p812) target = $region52
    $region51: #{keypoint_descriptor.1} parent=5 // pred_region
      %s815 = ssub.s32 %s12, 2
      // Predicated region
      $region53: #{keypoint_descriptor.1} parent=51 // pred_check
        %p816 = pneg %p172
      $region54: #{keypoint_descriptor.1} parent=51 // pred_check_branch
        %818 = sbr.rel (%p816) target = $region56
      $region55: #{keypoint_descriptor.1} parent=51 // pred_region
        %p819 = scmp.lt.s32.totalorder %s18, 3
        %s820 = scalar_select %p819, %s18, 3
        %s821 = smul.addr %s820, 8
        %s822 = scalar_lea.vmem %s6, %s821
      $region56: #{keypoint_descriptor.1} parent=51 // pred_fallthru
        _
    $region52: #{keypoint_descriptor.1} parent=5 // pred_fallthru
      _
  $region6: #{keypoint_descriptor.1} parent=0 // loop_footer
    %s16 = sadd.s32 1, %s12
  $region7: #{keypoint_descriptor.1} parent=0 // loop_footer_branch
    %11 = sbr.rel target = $region3
  $region8: #{keypoint_descriptor.1} parent=0 // loop_exit
    _

</llo_original>
